<compile_context>
chip_gen: v5e
topology: v5e:2x2
jax: 0.10.0
libtpu: 0.0.40
codegen_flags: <defaults>
</compile_context>

<pallas_src>
import math

import numpy as np
import jax
import jax.numpy as jnp
from jax.experimental import pallas as pl
from jax.experimental.pallas import tpu as pltpu


# ----------------------------------------------------------------------------
# SU(n) structure constants.  The original `structure_const` helper is not part
# of the provided spec, so the standard generalized-Gell-Mann version is used.
# TODO(synk): verify generator ordering/normalization against the original
# structure_const implementation (not provided in the spec).
# ----------------------------------------------------------------------------
def _gell_mann_matrices(n):
    mats = []
    # symmetric off-diagonal
    for j in range(n):
        for k in range(j + 1, n):
            m = np.zeros((n, n), dtype=np.complex128)
            m[j, k] = 1.0
            m[k, j] = 1.0
            mats.append(m)
    # antisymmetric off-diagonal
    for j in range(n):
        for k in range(j + 1, n):
            m = np.zeros((n, n), dtype=np.complex128)
            m[j, k] = -1.0j
            m[k, j] = 1.0j
            mats.append(m)
    # diagonal
    for l in range(1, n):
        m = np.zeros((n, n), dtype=np.complex128)
        c = math.sqrt(2.0 / (l * (l + 1)))
        for j in range(l):
            m[j, j] = c
        m[l, l] = -l * c
        mats.append(m)
    return np.stack(mats)  # (n^2 - 1, n, n), Tr(l_a l_b) = 2 delta_ab


def structure_const(n):
    lam = _gell_mann_matrices(n)
    dim = n * n - 1
    f = np.zeros((dim, dim, dim), dtype=np.float64)
    d = np.zeros((dim, dim, dim), dtype=np.float64)
    for a in range(dim):
        for b in range(dim):
            comm = lam[a] @ lam[b] - lam[b] @ lam[a]
            anti = lam[a] @ lam[b] + lam[b] @ lam[a]
            for c in range(dim):
                f[a, b, c] = np.real(np.trace(comm @ lam[c]) / 4.0j)
                d[a, b, c] = np.real(np.trace(anti @ lam[c]) / 4.0)
    return jnp.asarray(f, jnp.float32), jnp.asarray(d, jnp.float32)


# ----------------------------------------------------------------------------
# Parameter-dependent (x-independent) precompute, done once in the wrapper.
# ----------------------------------------------------------------------------
def _build_c_matrices(params, data_dim):
    D = data_dim
    iu0, iu1 = np.triu_indices(D)
    ju0, ju1 = np.triu_indices(D, 1)
    V = jnp.zeros((D, D), jnp.float32)
    V = V.at[iu0, iu1].set(params["r_x"])
    V = V.at[ju0, ju1].set(params["r_y"])
    # Replicate the torch forward's `v_x = v_y = torch.zeros(...)` aliasing:
    # both names refer to the SAME tensor, hence c_im == 0 exactly.
    v_x = v_y = V
    c_re = jnp.einsum("ki,kj->ij", v_x, v_x) + jnp.einsum("ki,kj->ij", v_y, v_y)
    c_re = c_re / jnp.trace(c_re)
    c_im = jnp.einsum("ki,kj->ij", v_x, v_y) - jnp.einsum("ki,kj->ij", v_y, v_x)
    c_re = params["N"] * c_re
    return c_re, c_im


def tri_ll_precompute(params, f, d, data_dim):
    """Fold every x-independent einsum of tri_LL.forward into (M, tr_id) with
       L(x) = x @ M + x + tr_id and forward(x) = x + 0.01 * L(x)."""
    c_re, c_im = _build_c_matrices(params, data_dim)
    A1 = -2.0 * jnp.einsum("mjk,nik,ij->nm", f, f, c_re)
    A2 = -2.0 * jnp.einsum("mik,njk,ij->nm", f, f, c_re)
    B1 = -2.0 * jnp.einsum("mjk,nik,ij->nm", f, d, c_im)
    B2 = 2.0 * jnp.einsum("mik,njk,ij->nm", f, d, c_im)
    H = 8.0 * jnp.einsum("kij,k->ji", f, params["omega"])
    tr_id = -8.0 * jnp.einsum("imj,ij->m", f, c_im)
    M = A1 + A2 + B1 + B2 + H
    return M.astype(jnp.float32), tr_id.astype(jnp.float32)


# ----------------------------------------------------------------------------
# Pallas kernel: batched application of  out = x + 0.01 * (x @ M + x + tr_id)
# on a transposed, lane-dense layout (D sublanes x batch lanes).
# ----------------------------------------------------------------------------
def make_tri_ll_kernel(D):
    def kernel(xT_ref, mT_ref, tr_ref, oT_ref):
        xT = xT_ref[...].astype(jnp.float32)   # (D, TB): D sublanes, TB lanes
        mT = mT_ref[...].astype(jnp.float32)   # (D, D), mT[m, j] = M[j, m]
        tr = tr_ref[...].astype(jnp.float32)   # (D, 1)
        # S(x)^T[m, t] = sum_j M[j, m] * x[t, j]: D broadcast multiply-adds on
        # full (D, TB) vregs -> pure VPU, no MXU pass for a K=D contraction.
        sT = mT[:, 0:1] * xT[0:1, :]
        for j in range(1, D):
            sT = sT + mT[:, j:j + 1] * xT[j:j + 1, :]
        lT = sT + xT + tr                      # L(x)^T = S(x)^T + (x + tr_id)^T
        oT_ref[...] = (xT + 0.01 * lT).astype(oT_ref.dtype)

    return kernel


def _round_up(v, m):
    return -(-v // m) * m


def tri_ll_apply(x, M, tr_id, *, max_tile_b=2048):
    B, D = x.shape
    TB = min(max_tile_b, _round_up(B, 128))
    Bp = _round_up(B, TB)
    xT = jnp.zeros((D, Bp), x.dtype).at[:, :B].set(x.T)   # lane-dense layout
    mT = M.T
    tr = tr_id.reshape(D, 1)

    outT = pl.pallas_call(
        make_tri_ll_kernel(D),
        out_shape=jax.ShapeDtypeStruct((D, Bp), x.dtype),
        grid=(Bp // TB,),
        in_specs=[
            pl.BlockSpec((D, TB), lambda b: (0, b)),   # batch-tiled activations
            pl.BlockSpec((D, D), lambda b: (0, 0)),    # resident weight matrix
            pl.BlockSpec((D, 1), lambda b: (0, 0)),    # resident bias
        ],
        out_specs=pl.BlockSpec((D, TB), lambda b: (0, b)),
        compiler_params=pltpu.CompilerParams(
            dimension_semantics=("parallel",),          # megacore split on v7x
        ),
    )(xT, mT, tr)
    return outT[:, :B].T


def tri_ll_forward(x, params, f, d, data_dim, *, max_tile_b=2048):
    M, tr_id = tri_ll_precompute(params, f, d, data_dim)
    return tri_ll_apply(x, M, tr_id, max_tile_b=max_tile_b)


# ----------------------------------------------------------------------------
# Pure-JAX literal translation of tri_LL.forward (verification only).
# ----------------------------------------------------------------------------
def tri_ll_reference(x, params, f, d, data_dim):
    c_re, c_im = _build_c_matrices(params, data_dim)
    re_1 = -2.0 * jnp.einsum("mjk,nik,ij,bn->bm", f, f, c_re, x)
    re_2 = -2.0 * jnp.einsum("mik,njk,ij,bn->bm", f, f, c_re, x)
    im_1 = -2.0 * jnp.einsum("mjk,nik,ij,bn->bm", f, d, c_im, x)
    im_2 = 2.0 * jnp.einsum("mik,njk,ij,bn->bm", f, d, c_im, x)
    tr_id = -8.0 * jnp.einsum("imj,ij->m", f, c_im)
    h_commutator_x = 8.0 * jnp.einsum("kij,k,bj->bi", f, params["omega"], x)
    d_super_x = re_1 + re_2 + im_1 + im_2
    S_x = h_commutator_x + d_super_x
    T_x = x + tr_id
    L_x = S_x + T_x
    return x + 0.01 * L_x


if __name__ == "__main__":
    # tri_LL(data_dim=8, layers=[...], nonlin=..., output_nonlin=...):
    # n = int(sqrt(8 + 1)) = 3 -> SU(3) structure constants, x is (B, 8).
    data_dim = 8
    batch = 512
    n = int(math.sqrt(data_dim + 1))
    assert n * n - 1 == data_dim

    f, d = structure_const(n)

    key = jax.random.PRNGKey(0)
    key, kx, kn, krx, kry, kw = jax.random.split(key, 6)
    x = jax.random.normal(kx, (batch, data_dim), dtype=jnp.float32)
    params = {
        "N": jax.random.uniform(kn, (1,), jnp.float32),
        "r_x": jax.random.uniform(krx, (data_dim * (data_dim + 1) // 2,), jnp.float32),
        "r_y": jax.random.uniform(kry, (data_dim * (data_dim - 1) // 2,), jnp.float32),
        "omega": jax.random.uniform(kw, (data_dim,), jnp.float32),
    }

    out = tri_ll_forward(x, params, f, d, data_dim, max_tile_b=256)
    out = jax.block_until_ready(out)

    ref = tri_ll_reference(x, params, f, d, data_dim)
    assert out.shape == (batch, data_dim)
    assert jnp.allclose(out, ref, atol=1e-4, rtol=1e-4), float(
        jnp.max(jnp.abs(out - ref))
    )

    print("KERNEL_OK")
</pallas_src>

<mosaic_0001>
module attributes {stable_mosaic.version = 11 : i64} {
  func.func @kernel(%arg0: i32, %arg1: memref<8x256xf32, #tpu.memory_space<vmem>>, %arg2: memref<8x8xf32, #tpu.memory_space<vmem>>, %arg3: memref<8x1xf32, #tpu.memory_space<vmem>>, %arg4: memref<8x256xf32, #tpu.memory_space<vmem>>) attributes {dimension_semantics = [#tpu.dimension_semantics<parallel>], iteration_bounds = array<i64: 2>, scalar_prefetch = 0 : i64, scratch_operands = 0 : i64, tpu.core_type = #tpu.core_type<tc>, window_params = [{transform_indices = @transform_0, window_bounds = array<i64: 8, 256>}, {pipeline_mode = #tpu.pipeline_mode<synchronous>, transform_indices = @transform_1, window_bounds = array<i64: 8, 8>}, {pipeline_mode = #tpu.pipeline_mode<synchronous>, transform_indices = @transform_2, window_bounds = array<i64: 8, 1>}, {transform_indices = @transform_3, window_bounds = array<i64: 8, 256>}]} {
    %c0 = arith.constant 0 : index
    %c0_0 = arith.constant 0 : index
    %0 = vector.load %arg1[%c0, %c0_0] : memref<8x256xf32, #tpu.memory_space<vmem>>, vector<8x256xf32>
    %c0_1 = arith.constant 0 : index
    %c0_2 = arith.constant 0 : index
    %1 = vector.load %arg2[%c0_1, %c0_2] : memref<8x8xf32, #tpu.memory_space<vmem>>, vector<8x8xf32>
    %c0_3 = arith.constant 0 : index
    %c0_4 = arith.constant 0 : index
    %2 = vector.load %arg3[%c0_3, %c0_4] : memref<8x1xf32, #tpu.memory_space<vmem>>, vector<8x1xf32>
    %3 = vector.extract_strided_slice %1 {offsets = [0, 0], sizes = [8, 1], strides = [1, 1]} : vector<8x8xf32> to vector<8x1xf32>
    %4 = vector.extract_strided_slice %0 {offsets = [0, 0], sizes = [1, 256], strides = [1, 1]} : vector<8x256xf32> to vector<1x256xf32>
    %5 = vector.broadcast %3 : vector<8x1xf32> to vector<8x256xf32>
    %6 = vector.broadcast %4 : vector<1x256xf32> to vector<8x256xf32>
    %7 = arith.mulf %5, %6 : vector<8x256xf32>
    %8 = vector.extract_strided_slice %1 {offsets = [0, 1], sizes = [8, 1], strides = [1, 1]} : vector<8x8xf32> to vector<8x1xf32>
    %9 = vector.extract_strided_slice %0 {offsets = [1, 0], sizes = [1, 256], strides = [1, 1]} : vector<8x256xf32> to vector<1x256xf32>
    %10 = vector.broadcast %8 : vector<8x1xf32> to vector<8x256xf32>
    %11 = vector.broadcast %9 : vector<1x256xf32> to vector<8x256xf32>
    %12 = arith.mulf %10, %11 : vector<8x256xf32>
    %13 = arith.addf %7, %12 : vector<8x256xf32>
    %14 = vector.extract_strided_slice %1 {offsets = [0, 2], sizes = [8, 1], strides = [1, 1]} : vector<8x8xf32> to vector<8x1xf32>
    %15 = vector.extract_strided_slice %0 {offsets = [2, 0], sizes = [1, 256], strides = [1, 1]} : vector<8x256xf32> to vector<1x256xf32>
    %16 = vector.broadcast %14 : vector<8x1xf32> to vector<8x256xf32>
    %17 = vector.broadcast %15 : vector<1x256xf32> to vector<8x256xf32>
    %18 = arith.mulf %16, %17 : vector<8x256xf32>
    %19 = arith.addf %13, %18 : vector<8x256xf32>
    %20 = vector.extract_strided_slice %1 {offsets = [0, 3], sizes = [8, 1], strides = [1, 1]} : vector<8x8xf32> to vector<8x1xf32>
    %21 = vector.extract_strided_slice %0 {offsets = [3, 0], sizes = [1, 256], strides = [1, 1]} : vector<8x256xf32> to vector<1x256xf32>
    %22 = vector.broadcast %20 : vector<8x1xf32> to vector<8x256xf32>
    %23 = vector.broadcast %21 : vector<1x256xf32> to vector<8x256xf32>
    %24 = arith.mulf %22, %23 : vector<8x256xf32>
    %25 = arith.addf %19, %24 : vector<8x256xf32>
    %26 = vector.extract_strided_slice %1 {offsets = [0, 4], sizes = [8, 1], strides = [1, 1]} : vector<8x8xf32> to vector<8x1xf32>
    %27 = vector.extract_strided_slice %0 {offsets = [4, 0], sizes = [1, 256], strides = [1, 1]} : vector<8x256xf32> to vector<1x256xf32>
    %28 = vector.broadcast %26 : vector<8x1xf32> to vector<8x256xf32>
    %29 = vector.broadcast %27 : vector<1x256xf32> to vector<8x256xf32>
    %30 = arith.mulf %28, %29 : vector<8x256xf32>
    %31 = arith.addf %25, %30 : vector<8x256xf32>
    %32 = vector.extract_strided_slice %1 {offsets = [0, 5], sizes = [8, 1], strides = [1, 1]} : vector<8x8xf32> to vector<8x1xf32>
    %33 = vector.extract_strided_slice %0 {offsets = [5, 0], sizes = [1, 256], strides = [1, 1]} : vector<8x256xf32> to vector<1x256xf32>
    %34 = vector.broadcast %32 : vector<8x1xf32> to vector<8x256xf32>
    %35 = vector.broadcast %33 : vector<1x256xf32> to vector<8x256xf32>
    %36 = arith.mulf %34, %35 : vector<8x256xf32>
    %37 = arith.addf %31, %36 : vector<8x256xf32>
    %38 = vector.extract_strided_slice %1 {offsets = [0, 6], sizes = [8, 1], strides = [1, 1]} : vector<8x8xf32> to vector<8x1xf32>
    %39 = vector.extract_strided_slice %0 {offsets = [6, 0], sizes = [1, 256], strides = [1, 1]} : vector<8x256xf32> to vector<1x256xf32>
    %40 = vector.broadcast %38 : vector<8x1xf32> to vector<8x256xf32>
    %41 = vector.broadcast %39 : vector<1x256xf32> to vector<8x256xf32>
    %42 = arith.mulf %40, %41 : vector<8x256xf32>
    %43 = arith.addf %37, %42 : vector<8x256xf32>
    %44 = vector.extract_strided_slice %1 {offsets = [0, 7], sizes = [8, 1], strides = [1, 1]} : vector<8x8xf32> to vector<8x1xf32>
    %45 = vector.extract_strided_slice %0 {offsets = [7, 0], sizes = [1, 256], strides = [1, 1]} : vector<8x256xf32> to vector<1x256xf32>
    %46 = vector.broadcast %44 : vector<8x1xf32> to vector<8x256xf32>
    %47 = vector.broadcast %45 : vector<1x256xf32> to vector<8x256xf32>
    %48 = arith.mulf %46, %47 : vector<8x256xf32>
    %49 = arith.addf %43, %48 : vector<8x256xf32>
    %50 = arith.addf %49, %0 : vector<8x256xf32>
    %51 = vector.broadcast %2 : vector<8x1xf32> to vector<8x256xf32>
    %52 = arith.addf %50, %51 : vector<8x256xf32>
    %cst = arith.constant 0.00999999977 : f32
    %53 = vector.broadcast %cst : f32 to vector<8x256xf32>
    %54 = arith.mulf %53, %52 : vector<8x256xf32>
    %55 = arith.addf %0, %54 : vector<8x256xf32>
    %c0_5 = arith.constant 0 : index
    %c0_6 = arith.constant 0 : index
    %56 = vector.load %arg4[%c0_5, %c0_6] : memref<8x256xf32, #tpu.memory_space<vmem>>, vector<8x256xf32>
    tpu.vector_store %arg4[%c0_5, %c0_6], %55 {strides = array<i32>} : memref<8x256xf32, #tpu.memory_space<vmem>>, vector<8x256xf32>,
    return
  }
  func.func @transform_0(%arg0: i32) -> (i32, i32) {
    %c0_i32 = arith.constant 0 : i32
    %c0_i32_0 = arith.constant 0 : i32
    return %c0_i32, %arg0 : i32, i32
  }
  func.func @transform_1(%arg0: i32) -> (i32, i32) {
    %c0_i32 = arith.constant 0 : i32
    %c0_i32_0 = arith.constant 0 : i32
    %c0_i32_1 = arith.constant 0 : i32
    return %c0_i32, %c0_i32_0 : i32, i32
  }
  func.func @transform_2(%arg0: i32) -> (i32, i32) {
    %c0_i32 = arith.constant 0 : i32
    %c0_i32_0 = arith.constant 0 : i32
    %c0_i32_1 = arith.constant 0 : i32
    return %c0_i32, %c0_i32_0 : i32, i32
  }
  func.func @transform_3(%arg0: i32) -> (i32, i32) {
    %c0_i32 = arith.constant 0 : i32
    %c0_i32_0 = arith.constant 0 : i32
    return %c0_i32, %arg0 : i32, i32
  }
}

</mosaic_0001>

<llo_original>
// kernel: tpu_custom_call.1
$region0: #{tpu_custom_call.1}
  #allocation0 [shape = 'u32[]', space=smem, size = 0x4, offset = 0x4, fixed_abs, tag = 'smem constant byte address 0x4 - core index']
  #allocation1 [shape = 'u32[72,128]{1,0:T(1,128)}', space=vmem, size = 0x9000, scoped, tag = 'internal scratch']
  %s0 = inlined_call_operand.hbm [shape: f32[8,512], index: 0, kind: input, shape index: {}]
  %s1 = inlined_call_operand.vmem [shape: f32[8,8], index: 1, kind: input, shape index: {}]
  %s2 = inlined_call_operand.vmem [shape: f32[8,1], index: 2, kind: input, shape index: {}]
  %s3 = inlined_call_operand.hbm [shape: f32[8,512], index: 3, kind: output, shape index: {}]
  %s4 = sld [smem:[#allocation0]]
  $region49: #{tpu_custom_call.1} parent=0
    _
  %s6 = ssub.s32 1, %s4
  %s7 = scalar_select 0, %s6, %s4
  $region1: #{tpu_custom_call.1} parent=0
    #allocation2 [shape = 'u8[16384]{0}', space=vmem, size = 0x4000, scoped, tag = 'input window, operand 0']
    #allocation3 [shape = 's32[2]{0}', space=sflag, size = 0x8, scoped, tag = 'scoped memory for tpu_custom_call.1']
    #allocation4 [shape = 's32[2]{0}', space=sflag, size = 0x8, scoped, tag = 'scoped memory for tpu_custom_call.1']
    #allocation5 [shape = 'u8[16384]{0}', space=vmem, size = 0x4000, scoped, tag = 'output window, operand 0']
    %8 = vsyncpa [#allocation3], 0
    %s9 = scalar_lea.sflag [#allocation3], 1
    %10 = vsyncpa %s9, 0
    %11 = vsyncpa [#allocation4], 0
    %s12 = scalar_lea.sflag [#allocation4], 1
    %13 = vsyncpa %s12, 0
    loop: start=0, step=1, limit=4
    $region2: #{tpu_custom_call.1} parent=1 // loop_pre_header
      _
    $region3: #{tpu_custom_call.1} parent=1 // loop_header
      %s15 = sphi 0, %s19
      %p16 = scmp.ge.s32.totalorder %s15, 4
      %s25 = sphi 0, %s27
      %s28 = sphi 0, %s25
      %s29 = sphi 0, %s28
      %s45 = sphi 0, %s29
      %s49 = sphi 0, %s49
      %s51 = sphi 0, %s49
      %s52 = sphi 0, %s51
      %s66 = sphi 0, %s52
      %s70 = sphi 0, %s70
      %s72 = sphi 0, %s70
      %s73 = sphi 0, %s72
      %s87 = sphi 0, %s73
      %s93 = sphi 0, %s95
      %s96 = sphi 0, %s93
      %s97 = sphi 0, %s96
      %s113 = sphi 0, %s97
    $region4: #{tpu_custom_call.1} parent=1 // loop_header_branch
      %18 = sbr.rel (%p16) target = $region8
    $region5: #{tpu_custom_call.1} parent=1 // loop_body
      %s20 = ssub.s32 %s15, 1
      %s21 = ssub.s32 %s15, 2
      %s22 = sadd.s32 %s15, 1
      %s23 = ssub.s32 %s15, %s22
      %p24 = scmp.eq.s32.totalorder %s23, 0
      %s26 = sadd.s32 %s25, 1
      %s27 = scalar_select %p24, %s25, %s26
      %p30 = pneg %p24
      %p31 = scmp.eq.s32.totalorder %s15, 1
      %p32 = por %p30, %p31
      %p33 = scmp.ne.s32.totalorder %s25, %s28
      %p34 = scmp.eq.s32.totalorder %s15, 0
      %p35 = por %p33, %p34
      %p36 = scmp.ne.s32.totalorder %s25, %s28
      %p37 = scmp.eq.s32.totalorder %s20, 1
      %p38 = por %p36, %p37
      %p39 = scmp.ne.s32.totalorder %s28, %s29
      %p40 = scmp.eq.s32.totalorder %s20, 0
      %p41 = por %p39, %p40
      %p42 = scmp.ne.s32.totalorder %s28, %s29
      %p43 = scmp.eq.s32.totalorder %s21, 1
      %p44 = por %p42, %p43
      %p46 = scmp.ne.s32.totalorder %s29, %s45
      %p47 = scmp.eq.s32.totalorder %s21, 0
      %p48 = por %p46, %p47
      %s50 = sadd.s32 %s49, 1
      %p53 = scmp.eq.s32.totalorder %s15, 1
      %p54 = scmp.ne.s32.totalorder %s49, %s51
      %p55 = scmp.eq.s32.totalorder %s15, 0
      %p56 = por %p54, %p55
      %p57 = scmp.ne.s32.totalorder %s49, %s51
      %p58 = scmp.eq.s32.totalorder %s20, 1
      %p59 = por %p57, %p58
      %p60 = scmp.ne.s32.totalorder %s51, %s52
      %p61 = scmp.eq.s32.totalorder %s20, 0
      %p62 = por %p60, %p61
      %p63 = scmp.ne.s32.totalorder %s51, %s52
      %p64 = scmp.eq.s32.totalorder %s21, 1
      %p65 = por %p63, %p64
      %p67 = scmp.ne.s32.totalorder %s52, %s66
      %p68 = scmp.eq.s32.totalorder %s21, 0
      %p69 = por %p67, %p68
      %s71 = sadd.s32 %s70, 1
      %p74 = scmp.eq.s32.totalorder %s15, 1
      %p75 = scmp.ne.s32.totalorder %s70, %s72
      %p76 = scmp.eq.s32.totalorder %s15, 0
      %p77 = por %p75, %p76
      %p78 = scmp.ne.s32.totalorder %s70, %s72
      %p79 = scmp.eq.s32.totalorder %s20, 1
      %p80 = por %p78, %p79
      %p81 = scmp.ne.s32.totalorder %s72, %s73
      %p82 = scmp.eq.s32.totalorder %s20, 0
      %p83 = por %p81, %p82
      %p84 = scmp.ne.s32.totalorder %s72, %s73
      %p85 = scmp.eq.s32.totalorder %s21, 1
      %p86 = por %p84, %p85
      %p88 = scmp.ne.s32.totalorder %s73, %s87
      %p89 = scmp.eq.s32.totalorder %s21, 0
      %p90 = por %p88, %p89
      %s91 = ssub.s32 %s15, %s22
      %p92 = scmp.eq.s32.totalorder %s91, 0
      %s94 = sadd.s32 %s93, 1
      %s95 = scalar_select %p92, %s93, %s94
      %p98 = pneg %p92
      %p99 = scmp.eq.s32.totalorder %s15, 1
      %p100 = por %p98, %p99
      %p101 = scmp.ne.s32.totalorder %s93, %s96
      %p102 = scmp.eq.s32.totalorder %s15, 0
      %p103 = por %p101, %p102
      %p104 = scmp.ne.s32.totalorder %s93, %s96
      %p105 = scmp.eq.s32.totalorder %s20, 1
      %p106 = por %p104, %p105
      %p107 = scmp.ne.s32.totalorder %s96, %s97
      %p108 = scmp.eq.s32.totalorder %s20, 0
      %p109 = por %p107, %p108
      %p110 = scmp.ne.s32.totalorder %s96, %s97
      %p111 = scmp.eq.s32.totalorder %s21, 1
      %p112 = por %p110, %p111
      %p114 = scmp.ne.s32.totalorder %s97, %s113
      %p115 = scmp.eq.s32.totalorder %s21, 0
      %p116 = por %p114, %p115
      %p117 = scmp.le.s32.totalorder 1, %s15
      %p118 = scmp.lt.s32.totalorder %s15, 3
      %p119 = pnand %p117, %p118
      %p120 = pneg %p119
      // Predicated region
      $region9: #{tpu_custom_call.1} parent=5 // pred_check
        _
      $region10: #{tpu_custom_call.1} parent=5 // pred_check_branch
        %122 = sbr.rel (%p119) target = $region12
      $region11: #{tpu_custom_call.1} parent=5 // pred_region
        %s123 = ssub.s32 %s15, 1
        // Predicated region
        $region13: #{tpu_custom_call.1} parent=11 // pred_check
          %p124 = pneg %p62
        $region14: #{tpu_custom_call.1} parent=11 // pred_check_branch
          %126 = sbr.rel (%p124) target = $region16
        $region15: #{tpu_custom_call.1} parent=11 // pred_region
          _
        $region16: #{tpu_custom_call.1} parent=11 // pred_fallthru
          _
        // Predicated region
        $region17: #{tpu_custom_call.1} parent=11 // pred_check
          %p127 = pneg %p83
        $region18: #{tpu_custom_call.1} parent=11 // pred_check_branch
          %129 = sbr.rel (%p127) target = $region20
        $region19: #{tpu_custom_call.1} parent=11 // pred_region
          _
        $region20: #{tpu_custom_call.1} parent=11 // pred_fallthru
          _
      $region12: #{tpu_custom_call.1} parent=5 // pred_fallthru
        _
      %p130 = scmp.lt.s32.totalorder %s15, 2
      // Predicated region
      $region21: #{tpu_custom_call.1} parent=5 // pred_check
        %p131 = pneg %p130
      $region22: #{tpu_custom_call.1} parent=5 // pred_check_branch
        %133 = sbr.rel (%p131) target = $region24
      $region23: #{tpu_custom_call.1} parent=5 // pred_region
        // Predicated region
        $region25: #{tpu_custom_call.1} parent=23 // pred_check
          %p134 = pneg %p35
        $region26: #{tpu_custom_call.1} parent=23 // pred_check_branch
          %136 = sbr.rel (%p134) target = $region28
        $region27: #{tpu_custom_call.1} parent=23 // pred_region
          %s137 = sand.u32 %s25, 1
          %s138 = scalar_lea.sflag [#allocation3], %s137
          %s139 = sand.u32 %s25, 1
          %s140 = smul.addr %s139, 16
          %s141 = scalar_lea.vmem [#allocation2], %s140
          %s142 = smul.u32 2, %s15
          %144 = vsyncadd %s138, 0
          %s145 = smul.addr %s142, 8
          %s146 = scalar_lea.hbm %s0, %s145
          %s148 = sshll.u32 %s146, 4
          %s149 = int_to_ptr.hbm [resolvable:$true] %s148
          %s150 = sshll.u32 %s141, 4
          %s151 = int_to_ptr.vmem [resolvable:$true] %s150
          %153 = dma.hbm_to_vmem [thread:$0]  %s149, 256, %s151, %s138
        $region28: #{tpu_custom_call.1} parent=23 // pred_fallthru
          _
      $region24: #{tpu_custom_call.1} parent=5 // pred_fallthru
        _
      %p154 = scmp.le.s32.totalorder 1, %s15
      %p155 = scmp.lt.s32.totalorder %s15, 3
      %p156 = pnand %p154, %p155
      %p157 = pneg %p156
      // Predicated region
      $region29: #{tpu_custom_call.1} parent=5 // pred_check
        _
      $region30: #{tpu_custom_call.1} parent=5 // pred_check_branch
        %159 = sbr.rel (%p156) target = $region32
      $region31: #{tpu_custom_call.1} parent=5 // pred_region
        %s160 = ssub.s32 %s15, 1
        %s161 = sand.u32 %s28, 1
        %s162 = scalar_lea.sflag [#allocation3], %s161
        %s163 = sand.u32 %s28, 1
        %s164 = smul.addr %s163, 16
        %s165 = scalar_lea.vmem [#allocation2], %s164
        // Predicated region
        $region33: #{tpu_custom_call.1} parent=31 // pred_check
          %p166 = pneg %p41
        $region34: #{tpu_custom_call.1} parent=31 // pred_check_branch
          %168 = sbr.rel (%p166) target = $region36
        $region35: #{tpu_custom_call.1} parent=31 // pred_region
          %170 = dma.done %s162, 256
        $region36: #{tpu_custom_call.1} parent=31 // pred_fallthru
          _
        %s171 = sand.u32 %s28, 1
        %s172 = scalar_lea.sflag [#allocation3], %s171
        %s173 = sand.u32 %s28, 1
        %s174 = smul.addr %s173, 16
        %s175 = scalar_lea.vmem [#allocation2], %s174
        %p176 = pneg %p41
        %p177 = pneg %p38
        %p178 = pneg %p62
        %p179 = pneg %p59
        %p180 = pneg %p83
        %p181 = pneg %p80
        %p182 = pneg %p109
        %p183 = pneg %p106
        %s184 = sand.u32 %s96, 1
        %s185 = scalar_lea.sflag [#allocation4], %s184
        %s186 = sand.u32 %s96, 1
        %s187 = smul.addr %s186, 16
        %s188 = scalar_lea.vmem [#allocation5], %s187
        %s189 = smul.u32 2, %s20
        %s190 = smul.u32 2, %s20
        %v191 = vld [vmem:[%s165] sm:$0xff]
        %v192 = vld [vmem:[%s165 + $0x8] sm:$0xff]
        %v193 = vld [vmem:[%s1] sm:$0xff]
        %v194 = vld [vmem:[%s2] sm:$0xff]
        %196 = vset.pattern.permute.xlu0 0
        %197 = vperm.xlu0 %196, %v193
        %v198 = vpop.permute.xlu0 %197
        %v200 = vperm.slane %v191, 0
        %v201 = vperm.slane %v192, 0
        %v202 = vmul.f32 %v198, %v200
        %v203 = vmul.f32 %v198, %v201
        %204 = vset.pattern.permute.xlu0 1
        %205 = vperm.xlu0 %204, %v193
        %v206 = vpop.permute.xlu0 %205
        %v208 = vperm.slane %v191, 1
        %v209 = vperm.slane %v192, 1
        %v210 = vmul.f32 %v206, %v208
        %v211 = vmul.f32 %v206, %v209
        %v212 = vadd.f32 %v202, %v210
        %v213 = vadd.f32 %v203, %v211
        %214 = vset.pattern.permute.xlu0 2
        %215 = vperm.xlu0 %214, %v193
        %v216 = vpop.permute.xlu0 %215
        %v218 = vperm.slane %v191, 2
        %v219 = vperm.slane %v192, 2
        %v220 = vmul.f32 %v216, %v218
        %v221 = vmul.f32 %v216, %v219
        %v222 = vadd.f32 %v212, %v220
        %v223 = vadd.f32 %v213, %v221
        %224 = vset.pattern.permute.xlu0 3
        %225 = vperm.xlu0 %224, %v193
        %v226 = vpop.permute.xlu0 %225
        %v228 = vperm.slane %v191, 3
        %v229 = vperm.slane %v192, 3
        %v230 = vmul.f32 %v226, %v228
        %v231 = vmul.f32 %v226, %v229
        %v232 = vadd.f32 %v222, %v230
        %v233 = vadd.f32 %v223, %v231
        %234 = vset.pattern.permute.xlu0 4
        %235 = vperm.xlu0 %234, %v193
        %v236 = vpop.permute.xlu0 %235
        %v238 = vperm.slane %v191, 4
        %v239 = vperm.slane %v192, 4
        %v240 = vmul.f32 %v236, %v238
        %v241 = vmul.f32 %v236, %v239
        %v242 = vadd.f32 %v232, %v240
        %v243 = vadd.f32 %v233, %v241
        %244 = vset.pattern.permute.xlu0 5
        %245 = vperm.xlu0 %244, %v193
        %v246 = vpop.permute.xlu0 %245
        %v248 = vperm.slane %v191, 5
        %v249 = vperm.slane %v192, 5
        %v250 = vmul.f32 %v246, %v248
        %v251 = vmul.f32 %v246, %v249
        %v252 = vadd.f32 %v242, %v250
        %v253 = vadd.f32 %v243, %v251
        %254 = vset.pattern.permute.xlu0 6
        %255 = vperm.xlu0 %254, %v193
        %v256 = vpop.permute.xlu0 %255
        %v258 = vperm.slane %v191, 6
        %v259 = vperm.slane %v192, 6
        %v260 = vmul.f32 %v256, %v258
        %v261 = vmul.f32 %v256, %v259
        %v262 = vadd.f32 %v252, %v260
        %v263 = vadd.f32 %v253, %v261
        %264 = vset.pattern.permute.xlu0 7
        %265 = vperm.xlu0 %264, %v193
        %v266 = vpop.permute.xlu0 %265
        %v268 = vperm.slane %v191, 7
        %v269 = vperm.slane %v192, 7
        %v270 = vmul.f32 %v266, %v268
        %v271 = vmul.f32 %v266, %v269
        %v272 = vadd.f32 %v262, %v270
        %v273 = vadd.f32 %v263, %v271
        %v274 = vadd.f32 %v272, %v191
        %v275 = vadd.f32 %v273, %v192
        %277 = vset.pattern.permute.xlu0 0
        %278 = vperm.xlu0 %277, %v194
        %v279 = vpop.permute.xlu0 %278
        %v281 = vadd.f32 %v274, %v279
        %v282 = vadd.f32 %v275, %v279
        %v283 = vmul.f32 %v281, 0.01
        %v284 = vmul.f32 %v282, 0.01
        %v285 = vadd.f32 %v191, %v283
        %v286 = vadd.f32 %v192, %v284
        %287 = vst [vmem:[%s188] sm:$0xff] %v285
        %288 = vst [vmem:[%s188 + $0x8] sm:$0xff] %v286
        %s289 = sand.u32 %s96, 1
        %s290 = scalar_lea.sflag [#allocation4], %s289
        %s291 = sand.u32 %s96, 1
        %s292 = smul.addr %s291, 16
        %s293 = scalar_lea.vmem [#allocation5], %s292
        // Predicated region
        $region37: #{tpu_custom_call.1} parent=31 // pred_check
          %p294 = pneg %p106
        $region38: #{tpu_custom_call.1} parent=31 // pred_check_branch
          %296 = sbr.rel (%p294) target = $region40
        $region39: #{tpu_custom_call.1} parent=31 // pred_region
          %s297 = smul.u32 2, %s20
          %299 = vsyncadd %s290, 0
          %s300 = smul.addr %s297, 8
          %s301 = scalar_lea.hbm %s3, %s300
          %s303 = sshll.u32 %s293, 4
          %s304 = int_to_ptr.vmem [resolvable:$true] %s303
          %s305 = sshll.u32 %s301, 4
          %s306 = int_to_ptr.hbm [resolvable:$true] %s305
          %308 = dma.vmem_to_hbm [thread:$0]  %s304, 256, %s306, %s290
        $region40: #{tpu_custom_call.1} parent=31 // pred_fallthru
          _
      $region32: #{tpu_custom_call.1} parent=5 // pred_fallthru
        _
      %p309 = scmp.le.s32.totalorder 2, %s15
      // Predicated region
      $region41: #{tpu_custom_call.1} parent=5 // pred_check
        %p310 = pneg %p309
      $region42: #{tpu_custom_call.1} parent=5 // pred_check_branch
        %312 = sbr.rel (%p310) target = $region44
      $region43: #{tpu_custom_call.1} parent=5 // pred_region
        %s313 = ssub.s32 %s15, 2
        // Predicated region
        $region45: #{tpu_custom_call.1} parent=43 // pred_check
          %p314 = pneg %p112
        $region46: #{tpu_custom_call.1} parent=43 // pred_check_branch
          %316 = sbr.rel (%p314) target = $region48
        $region47: #{tpu_custom_call.1} parent=43 // pred_region
          %s317 = sand.u32 %s97, 1
          %s318 = scalar_lea.sflag [#allocation4], %s317
          %s319 = sand.u32 %s97, 1
          %s320 = smul.addr %s319, 16
          %s321 = scalar_lea.vmem [#allocation5], %s320
          %323 = dma.done %s318, 256
        $region48: #{tpu_custom_call.1} parent=43 // pred_fallthru
          _
      $region44: #{tpu_custom_call.1} parent=5 // pred_fallthru
        _
    $region6: #{tpu_custom_call.1} parent=1 // loop_footer
      %s19 = sadd.s32 1, %s15
    $region7: #{tpu_custom_call.1} parent=1 // loop_footer_branch
      %14 = sbr.rel target = $region3
    $region8: #{tpu_custom_call.1} parent=1 // loop_exit
      _
    %324 = vsyncpa [#allocation3], 1
    %s325 = scalar_lea.sflag [#allocation3], 1
    %326 = vsyncpa %s325, 1
    %327 = vsyncpa [#allocation4], 1
    %s328 = scalar_lea.sflag [#allocation4], 1
    %329 = vsyncpa %s328, 1

</llo_original>
